<compile_context>
chip_gen: v5e
topology: v5e:2x2
jax: 0.10.0
libtpu: 0.0.40
codegen_flags: <defaults>
</compile_context>

<pallas_src>
import jax
import jax.numpy as jnp
from jax import lax
from jax.experimental import pallas as pl
from jax.experimental.pallas import tpu as pltpu

EPS = 1e-5
LANE = 128


def _round_up(x, m):
    return ((x + m - 1) // m) * m


# ----------------------------- kernels ------------------------------------- #

def _matmul_stats_kernel(p_ref, w_ref, z_ref, stats_ref):
    # p_ref:     (TILE_M, Kpad)  bf16 im2col patches (zero padded rows/cols)
    # w_ref:     (Kpad, Cpad)    bf16 flattened conv weights (resident block)
    # z_ref:     (TILE_M, Cpad)  f32 conv result (no bias)
    # stats_ref: (8, Cpad)       f32 row0 = per-tile sum, row1 = per-tile sumsq
    z = jnp.dot(p_ref[...], w_ref[...], preferred_element_type=jnp.float32)
    z_ref[...] = z
    # Single-sweep partial statistics (bias excluded -> zero-padded rows add 0).
    s = jnp.sum(z, axis=0, keepdims=True)        # (1, Cpad)
    ss = jnp.sum(z * z, axis=0, keepdims=True)   # (1, Cpad)
    row = lax.broadcasted_iota(jnp.int32, stats_ref.shape, 0)
    stats_ref[...] = jnp.where(row == 0, s, jnp.where(row == 1, ss, 0.0))


def _bn_relu_kernel(z_ref, scale_ref, shift_ref, o_ref):
    # z_ref: (TILE_M, Cpad) f32; scale/shift: (1, Cpad) f32 (bias folded into shift)
    o_ref[...] = jnp.maximum(z_ref[...] * scale_ref[...] + shift_ref[...], 0.0)


# ----------------------------- wrapper -------------------------------------- #

def _im2col_3x3x3(x):
    """x: (N, C, D, H, W) -> patches (N*D*H*W, C*27), column order (C, kd, kh, kw)."""
    N, C, D, H, W = x.shape
    xp = jnp.pad(x, ((0, 0), (0, 0), (1, 1), (1, 1), (1, 1)))
    cols = []
    for kd in range(3):
        for kh in range(3):
            for kw in range(3):
                cols.append(xp[:, :, kd:kd + D, kh:kh + H, kw:kw + W])
    patches = jnp.stack(cols, axis=2)                                # (N, C, 27, D, H, W)
    patches = patches.transpose(0, 3, 4, 5, 1, 2).reshape(N * D * H * W, C * 27)
    return patches


def conv_bn_relu(x, w, b, gamma, beta, *, tile_m=512):
    """x: (N, Cin, D, H, W); w: (Cout, Cin, 3, 3, 3); returns (N, Cout, D, H, W)."""
    N, Cin, D, H, W = x.shape
    Cout = w.shape[0]
    M = N * D * H * W
    K = Cin * 27
    Kpad = _round_up(K, LANE)
    Cpad = _round_up(Cout, LANE)              # lane-dense output / full MXU columns
    Mpad = _round_up(M, tile_m)
    n_tiles = Mpad // tile_m

    # im2col + pad, bf16 for the MXU (fp32 accumulation in the kernel).
    patches = _im2col_3x3x3(x)
    patches = jnp.pad(patches, ((0, Mpad - M), (0, Kpad - K))).astype(jnp.bfloat16)

    w_mat = w.reshape(Cout, K).T                                     # (K, Cout)
    w_mat = jnp.pad(w_mat, ((0, Kpad - K), (0, Cpad - Cout))).astype(jnp.bfloat16)

    cparams = pltpu.CompilerParams(
        dimension_semantics=("parallel",),
        vmem_limit_bytes=32 * 1024 * 1024,
    )

    # ---- pass 1: matmul + partial BN stats -------------------------------- #
    cost1 = pl.CostEstimate(
        flops=2 * Mpad * Kpad * Cpad,
        transcendentals=0,
        bytes_accessed=Mpad * Kpad * 2 + Kpad * Cpad * 2
        + Mpad * Cpad * 4 + n_tiles * 8 * Cpad * 4,
    )
    z, stats = pl.pallas_call(
        _matmul_stats_kernel,
        out_shape=(
            jax.ShapeDtypeStruct((Mpad, Cpad), jnp.float32),
            jax.ShapeDtypeStruct((n_tiles * 8, Cpad), jnp.float32),
        ),
        grid=(n_tiles,),
        in_specs=[
            pl.BlockSpec((tile_m, Kpad), lambda i: (i, 0)),
            pl.BlockSpec((Kpad, Cpad), lambda i: (0, 0)),   # weights stay resident
        ],
        out_specs=(
            pl.BlockSpec((tile_m, Cpad), lambda i: (i, 0)),
            pl.BlockSpec((8, Cpad), lambda i: (i, 0)),
        ),
        compiler_params=cparams,
        cost_estimate=cost1,
    )(patches, w_mat)

    # ---- cross-tile reduction + BN affine (tiny, done in the wrapper) ----- #
    stats = stats.reshape(n_tiles, 8, Cpad)
    sum_z = jnp.sum(stats[:, 0, :], axis=0)                  # (Cpad,)
    sumsq_z = jnp.sum(stats[:, 1, :], axis=0)                # (Cpad,)
    mean_z = sum_z / M                                       # zero pad rows add 0
    var = jnp.maximum(sumsq_z / M - mean_z * mean_z, 0.0)    # biased batch variance

    b_p = jnp.pad(b, (0, Cpad - Cout))
    gamma_p = jnp.pad(gamma, (0, Cpad - Cout))
    beta_p = jnp.pad(beta, (0, Cpad - Cout))

    mean_conv = mean_z + b_p                                 # conv output mean
    scale = gamma_p * lax.rsqrt(var + EPS)
    # Fold conv bias + BN mean/beta into one affine shift: y = z*scale + shift.
    shift = (b_p - mean_conv) * scale + beta_p

    scale2 = scale.reshape(1, Cpad)
    shift2 = shift.reshape(1, Cpad)

    # ---- pass 2: normalize + ReLU ------------------------------------------ #
    cost2 = pl.CostEstimate(
        flops=3 * Mpad * Cpad,
        transcendentals=0,
        bytes_accessed=2 * Mpad * Cpad * 4 + 2 * Cpad * 4,
    )
    out = pl.pallas_call(
        _bn_relu_kernel,
        out_shape=jax.ShapeDtypeStruct((Mpad, Cpad), jnp.float32),
        grid=(n_tiles,),
        in_specs=[
            pl.BlockSpec((tile_m, Cpad), lambda i: (i, 0)),
            pl.BlockSpec((1, Cpad), lambda i: (0, 0)),
            pl.BlockSpec((1, Cpad), lambda i: (0, 0)),
        ],
        out_specs=pl.BlockSpec((tile_m, Cpad), lambda i: (i, 0)),
        compiler_params=cparams,
        cost_estimate=cost2,
    )(z, scale2, shift2)

    # (Mpad, Cpad) -> strip padding -> NCDHW
    out = out[:M, :Cout].reshape(N, D, H, W, Cout).transpose(0, 4, 1, 2, 3)
    return out


# ----------------------------- reference & test ----------------------------- #

def _reference(x, w, b, gamma, beta):
    conv = lax.conv_general_dilated(
        x, w, window_strides=(1, 1, 1), padding=[(1, 1)] * 3,
        dimension_numbers=("NCDHW", "OIDHW", "NCDHW"),
    ) + b.reshape(1, -1, 1, 1, 1)
    mean = jnp.mean(conv, axis=(0, 2, 3, 4), keepdims=True)
    var = jnp.mean((conv - mean) ** 2, axis=(0, 2, 3, 4), keepdims=True)
    y = (conv - mean) * (gamma.reshape(1, -1, 1, 1, 1) * lax.rsqrt(var + EPS)) \
        + beta.reshape(1, -1, 1, 1, 1)
    return jnp.maximum(y, 0.0)


if __name__ == "__main__":
    key = jax.random.PRNGKey(0)
    N, Cin, Cout = 2, 4, 8
    D = H = W = 8

    kx, kw_, kb = jax.random.split(key, 3)
    x = jax.random.normal(kx, (N, Cin, D, H, W), dtype=jnp.float32)
    # Synthetic conv parameters (shapes from nn.Conv3d(nIn, nOut, 3)).
    w = jax.random.normal(kw_, (Cout, Cin, 3, 3, 3), dtype=jnp.float32) * 0.1
    b = jax.random.normal(kb, (Cout,), dtype=jnp.float32) * 0.1
    # BatchNorm3d default init: weight=1, bias=0.
    gamma = jnp.ones((Cout,), dtype=jnp.float32)
    beta = jnp.zeros((Cout,), dtype=jnp.float32)

    out = conv_bn_relu(x, w, b, gamma, beta)
    out = jax.block_until_ready(out)

    ref = _reference(x, w, b, gamma, beta)
    assert out.shape == (N, Cout, D, H, W)
    # bf16 MXU inputs -> ~1e-3 relative error on the conv before normalization.
    assert jnp.allclose(out, ref, atol=2e-2, rtol=2e-2), "mismatch vs reference"

    print("KERNEL_OK")
</pallas_src>

<mosaic_0001>
module attributes {stable_mosaic.version = 11 : i64} {
  func.func @_matmul_stats_kernel(%arg0: i32, %arg1: memref<512x128xbf16, #tpu.memory_space<vmem>>, %arg2: memref<128x128xbf16, #tpu.memory_space<vmem>>, %arg3: memref<512x128xf32, #tpu.memory_space<vmem>>, %arg4: memref<8x128xf32, #tpu.memory_space<vmem>>) attributes {dimension_semantics = [#tpu.dimension_semantics<parallel>], iteration_bounds = array<i64: 2>, scalar_prefetch = 0 : i64, scratch_operands = 0 : i64, tpu.core_type = #tpu.core_type<tc>, window_params = [{transform_indices = @transform_0, window_bounds = array<i64: 512, 128>}, {pipeline_mode = #tpu.pipeline_mode<synchronous>, transform_indices = @transform_1, window_bounds = array<i64: 128, 128>}, {transform_indices = @transform_2, window_bounds = array<i64: 512, 128>}, {transform_indices = @transform_3, window_bounds = array<i64: 8, 128>}]} {
    %c0 = arith.constant 0 : index
    %c0_0 = arith.constant 0 : index
    %0 = vector.load %arg1[%c0, %c0_0] : memref<512x128xbf16, #tpu.memory_space<vmem>>, vector<512x128xbf16>
    %c0_1 = arith.constant 0 : index
    %c0_2 = arith.constant 0 : index
    %1 = vector.load %arg2[%c0_1, %c0_2] : memref<128x128xbf16, #tpu.memory_space<vmem>>, vector<128x128xbf16>
    %cst = arith.constant dense<0.000000e+00> : vector<512x128xf32>
    %2 = tpu.matmul %0, %1, %cst {dimension_numbers = #tpu.dot_dimension_numbers<[1], [0], [0], [1], [0, 0, 1, 1], [], []>} : vector<512x128xbf16>, vector<128x128xbf16>, vector<512x128xf32> -> vector<512x128xf32>
    %c0_3 = arith.constant 0 : index
    %c0_4 = arith.constant 0 : index
    %3 = vector.load %arg3[%c0_3, %c0_4] : memref<512x128xf32, #tpu.memory_space<vmem>>, vector<512x128xf32>
    tpu.vector_store %arg3[%c0_3, %c0_4], %2 {strides = array<i32>} : memref<512x128xf32, #tpu.memory_space<vmem>>, vector<512x128xf32>,
    %cst_5 = arith.constant dense<0.000000e+00> : vector<128xf32>
    %4 = vector.multi_reduction <add>, %2, %cst_5 [0] : vector<512x128xf32> to vector<128xf32>
    %5 = vector.shape_cast %4 : vector<128xf32> to vector<1x128xf32>
    %6 = arith.mulf %2, %2 : vector<512x128xf32>
    %cst_6 = arith.constant dense<0.000000e+00> : vector<128xf32>
    %7 = vector.multi_reduction <add>, %6, %cst_6 [0] : vector<512x128xf32> to vector<128xf32>
    %8 = vector.shape_cast %7 : vector<128xf32> to vector<1x128xf32>
    %9 = tpu.iota {dimensions = array<i32: 0>} : vector<8x128xi32>
    %c0_i32 = arith.constant 0 : i32
    %10 = vector.broadcast %c0_i32 : i32 to vector<8x128xi32>
    %11 = arith.cmpi eq, %9, %10 : vector<8x128xi32>
    %c1_i32 = arith.constant 1 : i32
    %12 = vector.broadcast %c1_i32 : i32 to vector<8x128xi32>
    %13 = arith.cmpi eq, %9, %12 : vector<8x128xi32>
    %cst_7 = arith.constant 0.000000e+00 : f32
    %14 = vector.shape_cast %8 : vector<1x128xf32> to vector<1x128xf32>
    %15 = vector.broadcast %14 : vector<1x128xf32> to vector<8x128xf32>
    %16 = vector.broadcast %cst_7 : f32 to vector<8x128xf32>
    %17 = arith.select %13, %15, %16 : vector<8x128xi1>, vector<8x128xf32>
    %18 = vector.shape_cast %5 : vector<1x128xf32> to vector<1x128xf32>
    %19 = vector.broadcast %18 : vector<1x128xf32> to vector<8x128xf32>
    %20 = arith.select %11, %19, %17 : vector<8x128xi1>, vector<8x128xf32>
    %c0_8 = arith.constant 0 : index
    %c0_9 = arith.constant 0 : index
    %21 = vector.load %arg4[%c0_8, %c0_9] : memref<8x128xf32, #tpu.memory_space<vmem>>, vector<8x128xf32>
    tpu.vector_store %arg4[%c0_8, %c0_9], %20 {strides = array<i32>} : memref<8x128xf32, #tpu.memory_space<vmem>>, vector<8x128xf32>,
    return
  }
  func.func @transform_0(%arg0: i32) -> (i32, i32) {
    %c0_i32 = arith.constant 0 : i32
    %c0_i32_0 = arith.constant 0 : i32
    return %arg0, %c0_i32 : i32, i32
  }
  func.func @transform_1(%arg0: i32) -> (i32, i32) {
    %c0_i32 = arith.constant 0 : i32
    %c0_i32_0 = arith.constant 0 : i32
    %c0_i32_1 = arith.constant 0 : i32
    return %c0_i32, %c0_i32_0 : i32, i32
  }
  func.func @transform_2(%arg0: i32) -> (i32, i32) {
    %c0_i32 = arith.constant 0 : i32
    %c0_i32_0 = arith.constant 0 : i32
    return %arg0, %c0_i32 : i32, i32
  }
  func.func @transform_3(%arg0: i32) -> (i32, i32) {
    %c0_i32 = arith.constant 0 : i32
    %c0_i32_0 = arith.constant 0 : i32
    return %arg0, %c0_i32 : i32, i32
  }
}

</mosaic_0001>

<llo_original>
// kernel: tpu_custom_call.1
$region0: #{tpu_custom_call.1}
  #allocation0 [shape = 'u32[]', space=smem, size = 0x4, offset = 0x4, fixed_abs, tag = 'smem constant byte address 0x4 - core index']
  #allocation1 [shape = 'u32[72,128]{1,0:T(1,128)}', space=vmem, size = 0x9000, scoped, tag = 'internal scratch']
  %s0 = inlined_call_operand.hbm [shape: bf16[1024,128], index: 0, kind: input, shape index: {}]
  %s1 = inlined_call_operand.hbm [shape: bf16[128,128], index: 1, kind: input, shape index: {}]
  %s2 = inlined_call_operand.hbm [shape: f32[1024,128], index: 2, kind: output, shape index: {0}]
  %s3 = inlined_call_operand.hbm [shape: f32[16,128], index: 3, kind: output, shape index: {1}]
  %4 = xla_tuple %s2, %s3
  %s5 = sld [smem:[#allocation0]]
  $region57: #{tpu_custom_call.1} parent=0
    _
  %s7 = ssub.s32 1, %s5
  %s8 = scalar_select 0, %s7, %s5
  $region1: #{tpu_custom_call.1} parent=0
    #allocation2 [shape = 'u8[262144]{0}', space=vmem, size = 0x40000, scoped, tag = 'input window, operand 0']
    #allocation3 [shape = 's32[2]{0}', space=sflag, size = 0x8, scoped, tag = 'scoped memory for tpu_custom_call.1']
    #allocation4 [shape = 's32[2]{0}', space=sflag, size = 0x8, scoped, tag = 'scoped memory for tpu_custom_call.1']
    #allocation5 [shape = 'u8[32768]{0}', space=vmem, size = 0x8000, scoped, tag = 'input window, operand 1, single buffered']
    #allocation6 [shape = 's32[1]{0}', space=sflag, size = 0x4, scoped, tag = 'scoped memory for tpu_custom_call.1']
    #allocation7 [shape = 'u8[524288]{0}', space=vmem, size = 0x80000, scoped, tag = 'output window, operand 0']
    #allocation8 [shape = 'u8[8192]{0}', space=vmem, size = 0x2000, scoped, tag = 'output window, operand 1']
    #allocation9 [shape = 's32[2]{0}', space=sflag, size = 0x8, scoped, tag = 'scoped memory for tpu_custom_call.1']
    %9 = vsyncpa [#allocation3], 0
    %s10 = scalar_lea.sflag [#allocation3], 1
    %11 = vsyncpa %s10, 0
    %12 = vsyncpa [#allocation6], 0
    %13 = vsyncpa [#allocation4], 0
    %s14 = scalar_lea.sflag [#allocation4], 1
    %15 = vsyncpa %s14, 0
    %16 = vsyncpa [#allocation9], 0
    %s17 = scalar_lea.sflag [#allocation9], 1
    %18 = vsyncpa %s17, 0
    loop: start=0, step=1, limit=4
    $region2: #{tpu_custom_call.1} parent=1 // loop_pre_header
      _
    $region3: #{tpu_custom_call.1} parent=1 // loop_header
      %s20 = sphi 0, %s24
      %p21 = scmp.ge.s32.totalorder %s20, 4
      %s30 = sphi 0, %s32
      %s33 = sphi 0, %s30
      %s34 = sphi 0, %s33
      %s50 = sphi 0, %s34
      %s54 = sphi 0, %s54
      %s56 = sphi 0, %s54
      %s57 = sphi 0, %s56
      %s71 = sphi 0, %s57
      %s77 = sphi 0, %s79
      %s80 = sphi 0, %s77
      %s81 = sphi 0, %s80
      %s97 = sphi 0, %s81
      %s103 = sphi 0, %s105
      %s106 = sphi 0, %s103
      %s107 = sphi 0, %s106
      %s123 = sphi 0, %s107
    $region4: #{tpu_custom_call.1} parent=1 // loop_header_branch
      %23 = sbr.rel (%p21) target = $region8
    $region5: #{tpu_custom_call.1} parent=1 // loop_body
      %s25 = ssub.s32 %s20, 1
      %s26 = ssub.s32 %s20, 2
      %s27 = sadd.s32 %s20, 1
      %s28 = ssub.s32 %s20, %s27
      %p29 = scmp.eq.s32.totalorder %s28, 0
      %s31 = sadd.s32 %s30, 1
      %s32 = scalar_select %p29, %s30, %s31
      %p35 = pneg %p29
      %p36 = scmp.eq.s32.totalorder %s20, 1
      %p37 = por %p35, %p36
      %p38 = scmp.ne.s32.totalorder %s30, %s33
      %p39 = scmp.eq.s32.totalorder %s20, 0
      %p40 = por %p38, %p39
      %p41 = scmp.ne.s32.totalorder %s30, %s33
      %p42 = scmp.eq.s32.totalorder %s25, 1
      %p43 = por %p41, %p42
      %p44 = scmp.ne.s32.totalorder %s33, %s34
      %p45 = scmp.eq.s32.totalorder %s25, 0
      %p46 = por %p44, %p45
      %p47 = scmp.ne.s32.totalorder %s33, %s34
      %p48 = scmp.eq.s32.totalorder %s26, 1
      %p49 = por %p47, %p48
      %p51 = scmp.ne.s32.totalorder %s34, %s50
      %p52 = scmp.eq.s32.totalorder %s26, 0
      %p53 = por %p51, %p52
      %s55 = sadd.s32 %s54, 1
      %p58 = scmp.eq.s32.totalorder %s20, 1
      %p59 = scmp.ne.s32.totalorder %s54, %s56
      %p60 = scmp.eq.s32.totalorder %s20, 0
      %p61 = por %p59, %p60
      %p62 = scmp.ne.s32.totalorder %s54, %s56
      %p63 = scmp.eq.s32.totalorder %s25, 1
      %p64 = por %p62, %p63
      %p65 = scmp.ne.s32.totalorder %s56, %s57
      %p66 = scmp.eq.s32.totalorder %s25, 0
      %p67 = por %p65, %p66
      %p68 = scmp.ne.s32.totalorder %s56, %s57
      %p69 = scmp.eq.s32.totalorder %s26, 1
      %p70 = por %p68, %p69
      %p72 = scmp.ne.s32.totalorder %s57, %s71
      %p73 = scmp.eq.s32.totalorder %s26, 0
      %p74 = por %p72, %p73
      %s75 = ssub.s32 %s20, %s27
      %p76 = scmp.eq.s32.totalorder %s75, 0
      %s78 = sadd.s32 %s77, 1
      %s79 = scalar_select %p76, %s77, %s78
      %p82 = pneg %p76
      %p83 = scmp.eq.s32.totalorder %s20, 1
      %p84 = por %p82, %p83
      %p85 = scmp.ne.s32.totalorder %s77, %s80
      %p86 = scmp.eq.s32.totalorder %s20, 0
      %p87 = por %p85, %p86
      %p88 = scmp.ne.s32.totalorder %s77, %s80
      %p89 = scmp.eq.s32.totalorder %s25, 1
      %p90 = por %p88, %p89
      %p91 = scmp.ne.s32.totalorder %s80, %s81
      %p92 = scmp.eq.s32.totalorder %s25, 0
      %p93 = por %p91, %p92
      %p94 = scmp.ne.s32.totalorder %s80, %s81
      %p95 = scmp.eq.s32.totalorder %s26, 1
      %p96 = por %p94, %p95
      %p98 = scmp.ne.s32.totalorder %s81, %s97
      %p99 = scmp.eq.s32.totalorder %s26, 0
      %p100 = por %p98, %p99
      %s101 = ssub.s32 %s20, %s27
      %p102 = scmp.eq.s32.totalorder %s101, 0
      %s104 = sadd.s32 %s103, 1
      %s105 = scalar_select %p102, %s103, %s104
      %p108 = pneg %p102
      %p109 = scmp.eq.s32.totalorder %s20, 1
      %p110 = por %p108, %p109
      %p111 = scmp.ne.s32.totalorder %s103, %s106
      %p112 = scmp.eq.s32.totalorder %s20, 0
      %p113 = por %p111, %p112
      %p114 = scmp.ne.s32.totalorder %s103, %s106
      %p115 = scmp.eq.s32.totalorder %s25, 1
      %p116 = por %p114, %p115
      %p117 = scmp.ne.s32.totalorder %s106, %s107
      %p118 = scmp.eq.s32.totalorder %s25, 0
      %p119 = por %p117, %p118
      %p120 = scmp.ne.s32.totalorder %s106, %s107
      %p121 = scmp.eq.s32.totalorder %s26, 1
      %p122 = por %p120, %p121
      %p124 = scmp.ne.s32.totalorder %s107, %s123
      %p125 = scmp.eq.s32.totalorder %s26, 0
      %p126 = por %p124, %p125
      %p127 = scmp.le.s32.totalorder 1, %s20
      %p128 = scmp.lt.s32.totalorder %s20, 3
      %p129 = pnand %p127, %p128
      %p130 = pneg %p129
      // Predicated region
      $region9: #{tpu_custom_call.1} parent=5 // pred_check
        _
      $region10: #{tpu_custom_call.1} parent=5 // pred_check_branch
        %132 = sbr.rel (%p129) target = $region12
      $region11: #{tpu_custom_call.1} parent=5 // pred_region
        %s133 = ssub.s32 %s20, 1
        // Predicated region
        $region13: #{tpu_custom_call.1} parent=11 // pred_check
          %p134 = pneg %p67
        $region14: #{tpu_custom_call.1} parent=11 // pred_check_branch
          %136 = sbr.rel (%p134) target = $region16
        $region15: #{tpu_custom_call.1} parent=11 // pred_region
          %138 = vsyncadd [#allocation6], 0
          %s139 = sshll.u32 %s1, 4
          %s140 = int_to_ptr.hbm [resolvable:$true] %s139
          %s141 = sshll.u32 [#allocation5], 4
          %s142 = int_to_ptr.vmem [resolvable:$true] %s141
          %147 = dma.hbm_to_vmem [thread:$0]  %s140, 1024, %s142, [#allocation6], 64, 64, 4
        $region16: #{tpu_custom_call.1} parent=11 // pred_fallthru
          _
      $region12: #{tpu_custom_call.1} parent=5 // pred_fallthru
        _
      %p148 = scmp.lt.s32.totalorder %s20, 2
      // Predicated region
      $region17: #{tpu_custom_call.1} parent=5 // pred_check
        %p149 = pneg %p148
      $region18: #{tpu_custom_call.1} parent=5 // pred_check_branch
        %151 = sbr.rel (%p149) target = $region20
      $region19: #{tpu_custom_call.1} parent=5 // pred_region
        // Predicated region
        $region21: #{tpu_custom_call.1} parent=19 // pred_check
          %p152 = pneg %p40
        $region22: #{tpu_custom_call.1} parent=19 // pred_check_branch
          %154 = sbr.rel (%p152) target = $region24
        $region23: #{tpu_custom_call.1} parent=19 // pred_region
          %s155 = sand.u32 %s30, 1
          %s156 = scalar_lea.sflag [#allocation3], %s155
          %s157 = sand.u32 %s30, 1
          %s158 = smul.addr %s157, 256
          %s159 = scalar_lea.vmem [#allocation2], %s158
          %s160 = smul.u32 64, %s20
          %162 = vsyncadd %s156, 0
          %s163 = smul.addr %s160, 4
          %s164 = scalar_lea.hbm %s0, %s163
          %s165 = sshll.u32 %s164, 4
          %s166 = int_to_ptr.hbm [resolvable:$true] %s165
          %s167 = sshll.u32 %s159, 4
          %s168 = int_to_ptr.vmem [resolvable:$true] %s167
          %173 = dma.hbm_to_vmem [thread:$0]  %s166, 4096, %s168, %s156, 64, 64, 4
        $region24: #{tpu_custom_call.1} parent=19 // pred_fallthru
          _
      $region20: #{tpu_custom_call.1} parent=5 // pred_fallthru
        _
      %p174 = scmp.le.s32.totalorder 1, %s20
      %p175 = scmp.lt.s32.totalorder %s20, 3
      %p176 = pnand %p174, %p175
      %p177 = pneg %p176
      // Predicated region
      $region25: #{tpu_custom_call.1} parent=5 // pred_check
        _
      $region26: #{tpu_custom_call.1} parent=5 // pred_check_branch
        %179 = sbr.rel (%p176) target = $region28
      $region27: #{tpu_custom_call.1} parent=5 // pred_region
        %s180 = ssub.s32 %s20, 1
        %s181 = sand.u32 %s33, 1
        %s182 = scalar_lea.sflag [#allocation3], %s181
        %s183 = sand.u32 %s33, 1
        %s184 = smul.addr %s183, 256
        %s185 = scalar_lea.vmem [#allocation2], %s184
        // Predicated region
        $region29: #{tpu_custom_call.1} parent=27 // pred_check
          %p186 = pneg %p46
        $region30: #{tpu_custom_call.1} parent=27 // pred_check_branch
          %188 = sbr.rel (%p186) target = $region32
        $region31: #{tpu_custom_call.1} parent=27 // pred_region
          %190 = dma.done %s182, 4096
        $region32: #{tpu_custom_call.1} parent=27 // pred_fallthru
          _
        // Predicated region
        $region33: #{tpu_custom_call.1} parent=27 // pred_check
          %p191 = pneg %p67
        $region34: #{tpu_custom_call.1} parent=27 // pred_check_branch
          %193 = sbr.rel (%p191) target = $region36
        $region35: #{tpu_custom_call.1} parent=27 // pred_region
          %195 = dma.done [#allocation6], 1024
        $region36: #{tpu_custom_call.1} parent=27 // pred_fallthru
          _
        %s196 = sand.u32 %s33, 1
        %s197 = scalar_lea.sflag [#allocation3], %s196
        %s198 = sand.u32 %s33, 1
        %s199 = smul.addr %s198, 256
        %s200 = scalar_lea.vmem [#allocation2], %s199
        %p201 = pneg %p46
        %p202 = pneg %p43
        %p203 = pneg %p67
        %p204 = pneg %p64
        %p205 = pneg %p93
        %p206 = pneg %p90
        %s207 = sand.u32 %s80, 1
        %s208 = scalar_lea.sflag [#allocation4], %s207
        %s209 = sand.u32 %s80, 1
        %s210 = smul.addr %s209, 512
        %s211 = scalar_lea.vmem [#allocation7], %s210
        %p212 = pneg %p119
        %p213 = pneg %p116
        %s214 = sand.u32 %s106, 1
        %s215 = scalar_lea.sflag [#allocation9], %s214
        %s216 = sand.u32 %s106, 1
        %s217 = smul.addr %s216, 8
        %s218 = scalar_lea.vmem [#allocation8], %s217
        %s219 = smul.u32 64, %s25
        %s220 = smul.u32 64, %s25
        %v221 = vld [vmem:[%s185] sm:$0xf]
        %v222 = vld [vmem:[%s185 + $0x4] sm:$0xf]
        %v223 = vld [vmem:[%s185 + $0x8] sm:$0xf]
        %v224 = vld [vmem:[%s185 + $0xc] sm:$0xf]
        %v225 = vld [vmem:[%s185 + $0x10] sm:$0xf]
        %v226 = vld [vmem:[%s185 + $0x14] sm:$0xf]
        %v227 = vld [vmem:[%s185 + $0x18] sm:$0xf]
        %v228 = vld [vmem:[%s185 + $0x1c] sm:$0xf]
        %v229 = vld [vmem:[%s185 + $0x20] sm:$0xf]
        %v230 = vld [vmem:[%s185 + $0x24] sm:$0xf]
        %v231 = vld [vmem:[%s185 + $0x28] sm:$0xf]
        %v232 = vld [vmem:[%s185 + $0x2c] sm:$0xf]
        %v233 = vld [vmem:[%s185 + $0x30] sm:$0xf]
        %v234 = vld [vmem:[%s185 + $0x34] sm:$0xf]
        %v235 = vld [vmem:[%s185 + $0x38] sm:$0xf]
        %v236 = vld [vmem:[%s185 + $0x3c] sm:$0xf]
        %v237 = vld [vmem:[%s185 + $0x40] sm:$0xf]
        %v238 = vld [vmem:[%s185 + $0x44] sm:$0xf]
        %v239 = vld [vmem:[%s185 + $0x48] sm:$0xf]
        %v240 = vld [vmem:[%s185 + $0x4c] sm:$0xf]
        %v241 = vld [vmem:[%s185 + $0x50] sm:$0xf]
        %v242 = vld [vmem:[%s185 + $0x54] sm:$0xf]
        %v243 = vld [vmem:[%s185 + $0x58] sm:$0xf]
        %v244 = vld [vmem:[%s185 + $0x5c] sm:$0xf]
        %v245 = vld [vmem:[%s185 + $0x60] sm:$0xf]
        %v246 = vld [vmem:[%s185 + $0x64] sm:$0xf]
        %v247 = vld [vmem:[%s185 + $0x68] sm:$0xf]
        %v248 = vld [vmem:[%s185 + $0x6c] sm:$0xf]
        %v249 = vld [vmem:[%s185 + $0x70] sm:$0xf]
        %v250 = vld [vmem:[%s185 + $0x74] sm:$0xf]
        %v251 = vld [vmem:[%s185 + $0x78] sm:$0xf]
        %v252 = vld [vmem:[%s185 + $0x7c] sm:$0xf]
        %v253 = vld [vmem:[%s185 + $0x80] sm:$0xf]
        %v254 = vld [vmem:[%s185 + $0x84] sm:$0xf]
        %v255 = vld [vmem:[%s185 + $0x88] sm:$0xf]
        %v256 = vld [vmem:[%s185 + $0x8c] sm:$0xf]
        %v257 = vld [vmem:[%s185 + $0x90] sm:$0xf]
        %v258 = vld [vmem:[%s185 + $0x94] sm:$0xf]
        %v259 = vld [vmem:[%s185 + $0x98] sm:$0xf]
        %v260 = vld [vmem:[%s185 + $0x9c] sm:$0xf]
        %v261 = vld [vmem:[%s185 + $0xa0] sm:$0xf]
        %v262 = vld [vmem:[%s185 + $0xa4] sm:$0xf]
        %v263 = vld [vmem:[%s185 + $0xa8] sm:$0xf]
        %v264 = vld [vmem:[%s185 + $0xac] sm:$0xf]
        %v265 = vld [vmem:[%s185 + $0xb0] sm:$0xf]
        %v266 = vld [vmem:[%s185 + $0xb4] sm:$0xf]
        %v267 = vld [vmem:[%s185 + $0xb8] sm:$0xf]
        %v268 = vld [vmem:[%s185 + $0xbc] sm:$0xf]
        %v269 = vld [vmem:[%s185 + $0xc0] sm:$0xf]
        %v270 = vld [vmem:[%s185 + $0xc4] sm:$0xf]
        %v271 = vld [vmem:[%s185 + $0xc8] sm:$0xf]
        %v272 = vld [vmem:[%s185 + $0xcc] sm:$0xf]
        %v273 = vld [vmem:[%s185 + $0xd0] sm:$0xf]
        %v274 = vld [vmem:[%s185 + $0xd4] sm:$0xf]
        %v275 = vld [vmem:[%s185 + $0xd8] sm:$0xf]
        %v276 = vld [vmem:[%s185 + $0xdc] sm:$0xf]
        %v277 = vld [vmem:[%s185 + $0xe0] sm:$0xf]
        %v278 = vld [vmem:[%s185 + $0xe4] sm:$0xf]
        %v279 = vld [vmem:[%s185 + $0xe8] sm:$0xf]
        %v280 = vld [vmem:[%s185 + $0xec] sm:$0xf]
        %v281 = vld [vmem:[%s185 + $0xf0] sm:$0xf]
        %v282 = vld [vmem:[%s185 + $0xf4] sm:$0xf]
        %v283 = vld [vmem:[%s185 + $0xf8] sm:$0xf]
        %v284 = vld [vmem:[%s185 + $0xfc] sm:$0xf]
        %v285 = vld [vmem:[#allocation5] sm:$0xf]
        %v286 = vld [vmem:[#allocation5 + $0x4] sm:$0xf]
        %v287 = vld [vmem:[#allocation5 + $0x8] sm:$0xf]
        %v288 = vld [vmem:[#allocation5 + $0xc] sm:$0xf]
        %v289 = vld [vmem:[#allocation5 + $0x10] sm:$0xf]
        %v290 = vld [vmem:[#allocation5 + $0x14] sm:$0xf]
        %v291 = vld [vmem:[#allocation5 + $0x18] sm:$0xf]
        %v292 = vld [vmem:[#allocation5 + $0x1c] sm:$0xf]
        %v293 = vld [vmem:[#allocation5 + $0x20] sm:$0xf]
        %v294 = vld [vmem:[#allocation5 + $0x24] sm:$0xf]
        %v295 = vld [vmem:[#allocation5 + $0x28] sm:$0xf]
        %v296 = vld [vmem:[#allocation5 + $0x2c] sm:$0xf]
        %v297 = vld [vmem:[#allocation5 + $0x30] sm:$0xf]
        %v298 = vld [vmem:[#allocation5 + $0x34] sm:$0xf]
        %v299 = vld [vmem:[#allocation5 + $0x38] sm:$0xf]
        %v300 = vld [vmem:[#allocation5 + $0x3c] sm:$0xf]
        %v365 = vunpack.c.l.b16 %v221
        %v366 = vunpack.c.l.b16 %v222
        %v367 = vunpack.c.l.b16 %v223
        %v368 = vunpack.c.l.b16 %v224
        %v369 = vunpack.c.l.b16 %v225
        %v370 = vunpack.c.l.b16 %v226
        %v371 = vunpack.c.l.b16 %v227
        %v372 = vunpack.c.l.b16 %v228
        %v373 = vunpack.c.l.b16 %v229
        %v374 = vunpack.c.l.b16 %v230
        %v375 = vunpack.c.l.b16 %v231
        %v376 = vunpack.c.l.b16 %v232
        %v377 = vunpack.c.l.b16 %v233
        %v378 = vunpack.c.l.b16 %v234
        %v379 = vunpack.c.l.b16 %v235
        %v380 = vunpack.c.l.b16 %v236
        %v381 = vunpack.c.l.b16 %v237
        %v382 = vunpack.c.l.b16 %v238
        %v383 = vunpack.c.l.b16 %v239
        %v384 = vunpack.c.l.b16 %v240
        %v385 = vunpack.c.l.b16 %v241
        %v386 = vunpack.c.l.b16 %v242
        %v387 = vunpack.c.l.b16 %v243
        %v388 = vunpack.c.l.b16 %v244
        %v389 = vunpack.c.l.b16 %v245
        %v390 = vunpack.c.l.b16 %v246
        %v391 = vunpack.c.l.b16 %v247
        %v392 = vunpack.c.l.b16 %v248
        %v393 = vunpack.c.l.b16 %v249
        %v394 = vunpack.c.l.b16 %v250
        %v395 = vunpack.c.l.b16 %v251
        %v396 = vunpack.c.l.b16 %v252
        %v397 = vunpack.c.l.b16 %v253
        %v398 = vunpack.c.l.b16 %v254
        %v399 = vunpack.c.l.b16 %v255
        %v400 = vunpack.c.l.b16 %v256
        %v401 = vunpack.c.l.b16 %v257
        %v402 = vunpack.c.l.b16 %v258
        %v403 = vunpack.c.l.b16 %v259
        %v404 = vunpack.c.l.b16 %v260
        %v405 = vunpack.c.l.b16 %v261
        %v406 = vunpack.c.l.b16 %v262
        %v407 = vunpack.c.l.b16 %v263
        %v408 = vunpack.c.l.b16 %v264
        %v409 = vunpack.c.l.b16 %v265
        %v410 = vunpack.c.l.b16 %v266
        %v411 = vunpack.c.l.b16 %v267
        %v412 = vunpack.c.l.b16 %v268
        %v413 = vunpack.c.l.b16 %v269
        %v414 = vunpack.c.l.b16 %v270
        %v415 = vunpack.c.l.b16 %v271
        %v416 = vunpack.c.l.b16 %v272
        %v417 = vunpack.c.l.b16 %v273
        %v418 = vunpack.c.l.b16 %v274
        %v419 = vunpack.c.l.b16 %v275
        %v420 = vunpack.c.l.b16 %v276
        %v421 = vunpack.c.l.b16 %v277
        %v422 = vunpack.c.l.b16 %v278
        %v423 = vunpack.c.l.b16 %v279
        %v424 = vunpack.c.l.b16 %v280
        %v425 = vunpack.c.l.b16 %v281
        %v426 = vunpack.c.l.b16 %v282
        %v427 = vunpack.c.l.b16 %v283
        %v428 = vunpack.c.l.b16 %v284
        %v429 = vpack.c.b16 %v366, %v365
        %v430 = vpack.c.b16 %v368, %v367
        %v431 = vpack.c.b16 %v370, %v369
        %v432 = vpack.c.b16 %v372, %v371
        %v433 = vpack.c.b16 %v374, %v373
        %v434 = vpack.c.b16 %v376, %v375
        %v435 = vpack.c.b16 %v378, %v377
        %v436 = vpack.c.b16 %v380, %v379
        %v437 = vpack.c.b16 %v382, %v381
        %v438 = vpack.c.b16 %v384, %v383
        %v439 = vpack.c.b16 %v386, %v385
        %v440 = vpack.c.b16 %v388, %v387
        %v441 = vpack.c.b16 %v390, %v389
        %v442 = vpack.c.b16 %v392, %v391
        %v443 = vpack.c.b16 %v394, %v393
        %v444 = vpack.c.b16 %v396, %v395
        %v445 = vpack.c.b16 %v398, %v397
        %v446 = vpack.c.b16 %v400, %v399
        %v447 = vpack.c.b16 %v402, %v401
        %v448 = vpack.c.b16 %v404, %v403
        %v449 = vpack.c.b16 %v406, %v405
        %v450 = vpack.c.b16 %v408, %v407
        %v451 = vpack.c.b16 %v410, %v409
        %v452 = vpack.c.b16 %v412, %v411
        %v453 = vpack.c.b16 %v414, %v413
        %v454 = vpack.c.b16 %v416, %v415
        %v455 = vpack.c.b16 %v418, %v417
        %v456 = vpack.c.b16 %v420, %v419
        %v457 = vpack.c.b16 %v422, %v421
        %v458 = vpack.c.b16 %v424, %v423
        %v459 = vpack.c.b16 %v426, %v425
        %v460 = vpack.c.b16 %v428, %v427
        %v509 = vunpack.c.l.b16 %v285
        %v510 = vunpack.c.l.b16 %v286
        %v511 = vunpack.c.l.b16 %v287
        %v512 = vunpack.c.l.b16 %v288
        %v513 = vunpack.c.l.b16 %v289
        %v514 = vunpack.c.l.b16 %v290
        %v515 = vunpack.c.l.b16 %v291
        %v516 = vunpack.c.l.b16 %v292
        %v517 = vunpack.c.l.b16 %v293
        %v518 = vunpack.c.l.b16 %v294
        %v519 = vunpack.c.l.b16 %v295
        %v520 = vunpack.c.l.b16 %v296
        %v521 = vunpack.c.l.b16 %v297
        %v522 = vunpack.c.l.b16 %v298
        %v523 = vunpack.c.l.b16 %v299
        %v524 = vunpack.c.l.b16 %v300
        %v525 = vpack.c.b16 %v510, %v509
        %v526 = vpack.c.b16 %v512, %v511
        %v527 = vpack.c.b16 %v514, %v513
        %v528 = vpack.c.b16 %v516, %v515
        %v529 = vpack.c.b16 %v518, %v517
        %v530 = vpack.c.b16 %v520, %v519
        %v531 = vpack.c.b16 %v522, %v521
        %v532 = vpack.c.b16 %v524, %v523
        %541 = vmatpush.bf16.msra.mxu0 %v532
        %542 = vmatpush.bf16.msra.mxu0 %v531
        %543 = vmatpush.bf16.msra.mxu0 %v530
        %544 = vmatpush.bf16.msra.mxu0 %v529
        %545 = vmatpush.bf16.msra.mxu0 %v528
        %546 = vmatpush.bf16.msra.mxu0 %v527
        %547 = vmatpush.bf16.msra.mxu0 %v526
        %548 = vmatpush.bf16.msra.mxu0 %v525
        %549 = vmatmul.bf16.gmra.mxu0 %v429
        %v550 = vpop.f32.mrf.mxu0
        %v551 = vadd.f32 0.0, %v550
        %v552 = vpop.f32.mrf.mxu0
        %v553 = vadd.f32 0.0, %v552
        %554 = vmatmul.bf16.gmra.mxu0 %v430
        %v555 = vpop.f32.mrf.mxu0
        %v556 = vadd.f32 0.0, %v555
        %v557 = vpop.f32.mrf.mxu0
        %v558 = vadd.f32 0.0, %v557
        %559 = vmatmul.bf16.gmra.mxu0 %v431
        %v560 = vpop.f32.mrf.mxu0
        %v561 = vadd.f32 0.0, %v560
        %v562 = vpop.f32.mrf.mxu0
        %v563 = vadd.f32 0.0, %v562
        %564 = vmatmul.bf16.gmra.mxu0 %v432
        %v565 = vpop.f32.mrf.mxu0
        %v566 = vadd.f32 0.0, %v565
        %v567 = vpop.f32.mrf.mxu0
        %v568 = vadd.f32 0.0, %v567
        %569 = vmatmul.bf16.gmra.mxu0 %v433
        %v570 = vpop.f32.mrf.mxu0
        %v571 = vadd.f32 0.0, %v570
        %v572 = vpop.f32.mrf.mxu0
        %v573 = vadd.f32 0.0, %v572
        %574 = vmatmul.bf16.gmra.mxu0 %v434
        %v575 = vpop.f32.mrf.mxu0
        %v576 = vadd.f32 0.0, %v575
        %v577 = vpop.f32.mrf.mxu0
        %v578 = vadd.f32 0.0, %v577
        %579 = vmatmul.bf16.gmra.mxu0 %v435
        %v580 = vpop.f32.mrf.mxu0
        %v581 = vadd.f32 0.0, %v580
        %v582 = vpop.f32.mrf.mxu0
        %v583 = vadd.f32 0.0, %v582
        %584 = vmatmul.bf16.gmra.mxu0 %v436
        %v585 = vpop.f32.mrf.mxu0
        %v586 = vadd.f32 0.0, %v585
        %v587 = vpop.f32.mrf.mxu0
        %v588 = vadd.f32 0.0, %v587
        %589 = vmatmul.bf16.gmra.mxu0 %v437
        %v590 = vpop.f32.mrf.mxu0
        %v591 = vadd.f32 0.0, %v590
        %v592 = vpop.f32.mrf.mxu0
        %v593 = vadd.f32 0.0, %v592
        %594 = vmatmul.bf16.gmra.mxu0 %v438
        %v595 = vpop.f32.mrf.mxu0
        %v596 = vadd.f32 0.0, %v595
        %v597 = vpop.f32.mrf.mxu0
        %v598 = vadd.f32 0.0, %v597
        %599 = vmatmul.bf16.gmra.mxu0 %v439
        %v600 = vpop.f32.mrf.mxu0
        %v601 = vadd.f32 0.0, %v600
        %v602 = vpop.f32.mrf.mxu0
        %v603 = vadd.f32 0.0, %v602
        %604 = vmatmul.bf16.gmra.mxu0 %v440
        %v605 = vpop.f32.mrf.mxu0
        %v606 = vadd.f32 0.0, %v605
        %v607 = vpop.f32.mrf.mxu0
        %v608 = vadd.f32 0.0, %v607
        %609 = vmatmul.bf16.gmra.mxu0 %v441
        %v610 = vpop.f32.mrf.mxu0
        %v611 = vadd.f32 0.0, %v610
        %v612 = vpop.f32.mrf.mxu0
        %v613 = vadd.f32 0.0, %v612
        %614 = vmatmul.bf16.gmra.mxu0 %v442
        %v615 = vpop.f32.mrf.mxu0
        %v616 = vadd.f32 0.0, %v615
        %v617 = vpop.f32.mrf.mxu0
        %v618 = vadd.f32 0.0, %v617
        %619 = vmatmul.bf16.gmra.mxu0 %v443
        %v620 = vpop.f32.mrf.mxu0
        %v621 = vadd.f32 0.0, %v620
        %v622 = vpop.f32.mrf.mxu0
        %v623 = vadd.f32 0.0, %v622
        %624 = vmatmul.bf16.gmra.mxu0 %v444
        %v625 = vpop.f32.mrf.mxu0
        %v626 = vadd.f32 0.0, %v625
        %v627 = vpop.f32.mrf.mxu0
        %v628 = vadd.f32 0.0, %v627
        %629 = vmatmul.bf16.gmra.mxu0 %v445
        %v630 = vpop.f32.mrf.mxu0
        %v631 = vadd.f32 0.0, %v630
        %v632 = vpop.f32.mrf.mxu0
        %v633 = vadd.f32 0.0, %v632
        %634 = vmatmul.bf16.gmra.mxu0 %v446
        %v635 = vpop.f32.mrf.mxu0
        %v636 = vadd.f32 0.0, %v635
        %v637 = vpop.f32.mrf.mxu0
        %v638 = vadd.f32 0.0, %v637
        %639 = vmatmul.bf16.gmra.mxu0 %v447
        %v640 = vpop.f32.mrf.mxu0
        %v641 = vadd.f32 0.0, %v640
        %v642 = vpop.f32.mrf.mxu0
        %v643 = vadd.f32 0.0, %v642
        %644 = vmatmul.bf16.gmra.mxu0 %v448
        %v645 = vpop.f32.mrf.mxu0
        %v646 = vadd.f32 0.0, %v645
        %v647 = vpop.f32.mrf.mxu0
        %v648 = vadd.f32 0.0, %v647
        %649 = vmatmul.bf16.gmra.mxu0 %v449
        %v650 = vpop.f32.mrf.mxu0
        %v651 = vadd.f32 0.0, %v650
        %v652 = vpop.f32.mrf.mxu0
        %v653 = vadd.f32 0.0, %v652
        %654 = vmatmul.bf16.gmra.mxu0 %v450
        %v655 = vpop.f32.mrf.mxu0
        %v656 = vadd.f32 0.0, %v655
        %v657 = vpop.f32.mrf.mxu0
        %v658 = vadd.f32 0.0, %v657
        %659 = vmatmul.bf16.gmra.mxu0 %v451
        %v660 = vpop.f32.mrf.mxu0
        %v661 = vadd.f32 0.0, %v660
        %v662 = vpop.f32.mrf.mxu0
        %v663 = vadd.f32 0.0, %v662
        %664 = vmatmul.bf16.gmra.mxu0 %v452
        %v665 = vpop.f32.mrf.mxu0
        %v666 = vadd.f32 0.0, %v665
        %v667 = vpop.f32.mrf.mxu0
        %v668 = vadd.f32 0.0, %v667
        %669 = vmatmul.bf16.gmra.mxu0 %v453
        %v670 = vpop.f32.mrf.mxu0
        %v671 = vadd.f32 0.0, %v670
        %v672 = vpop.f32.mrf.mxu0
        %v673 = vadd.f32 0.0, %v672
        %674 = vmatmul.bf16.gmra.mxu0 %v454
        %v675 = vpop.f32.mrf.mxu0
        %v676 = vadd.f32 0.0, %v675
        %v677 = vpop.f32.mrf.mxu0
        %v678 = vadd.f32 0.0, %v677
        %679 = vmatmul.bf16.gmra.mxu0 %v455
        %v680 = vpop.f32.mrf.mxu0
        %v681 = vadd.f32 0.0, %v680
        %v682 = vpop.f32.mrf.mxu0
        %v683 = vadd.f32 0.0, %v682
        %684 = vmatmul.bf16.gmra.mxu0 %v456
        %v685 = vpop.f32.mrf.mxu0
        %v686 = vadd.f32 0.0, %v685
        %v687 = vpop.f32.mrf.mxu0
        %v688 = vadd.f32 0.0, %v687
        %689 = vmatmul.bf16.gmra.mxu0 %v457
        %v690 = vpop.f32.mrf.mxu0
        %v691 = vadd.f32 0.0, %v690
        %v692 = vpop.f32.mrf.mxu0
        %v693 = vadd.f32 0.0, %v692
        %694 = vmatmul.bf16.gmra.mxu0 %v458
        %v695 = vpop.f32.mrf.mxu0
        %v696 = vadd.f32 0.0, %v695
        %v697 = vpop.f32.mrf.mxu0
        %v698 = vadd.f32 0.0, %v697
        %699 = vmatmul.bf16.gmra.mxu0 %v459
        %v700 = vpop.f32.mrf.mxu0
        %v701 = vadd.f32 0.0, %v700
        %v702 = vpop.f32.mrf.mxu0
        %v703 = vadd.f32 0.0, %v702
        %704 = vmatmul.bf16.gmra.mxu0 %v460
        %v705 = vpop.f32.mrf.mxu0
        %v706 = vadd.f32 0.0, %v705
        %v707 = vpop.f32.mrf.mxu0
        %v708 = vadd.f32 0.0, %v707
        %709 = vdwg.mxu0
        %710 = vst [vmem:[%s211] sm:$0xff] %v551
        %711 = vst [vmem:[%s211 + $0x8] sm:$0xff] %v553
        %712 = vst [vmem:[%s211 + $0x10] sm:$0xff] %v556
        %713 = vst [vmem:[%s211 + $0x18] sm:$0xff] %v558
        %714 = vst [vmem:[%s211 + $0x20] sm:$0xff] %v561
        %715 = vst [vmem:[%s211 + $0x28] sm:$0xff] %v563
        %716 = vst [vmem:[%s211 + $0x30] sm:$0xff] %v566
        %717 = vst [vmem:[%s211 + $0x38] sm:$0xff] %v568
        %718 = vst [vmem:[%s211 + $0x40] sm:$0xff] %v571
        %719 = vst [vmem:[%s211 + $0x48] sm:$0xff] %v573
        %720 = vst [vmem:[%s211 + $0x50] sm:$0xff] %v576
        %721 = vst [vmem:[%s211 + $0x58] sm:$0xff] %v578
        %722 = vst [vmem:[%s211 + $0x60] sm:$0xff] %v581
        %723 = vst [vmem:[%s211 + $0x68] sm:$0xff] %v583
        %724 = vst [vmem:[%s211 + $0x70] sm:$0xff] %v586
        %725 = vst [vmem:[%s211 + $0x78] sm:$0xff] %v588
        %726 = vst [vmem:[%s211 + $0x80] sm:$0xff] %v591
        %727 = vst [vmem:[%s211 + $0x88] sm:$0xff] %v593
        %728 = vst [vmem:[%s211 + $0x90] sm:$0xff] %v596
        %729 = vst [vmem:[%s211 + $0x98] sm:$0xff] %v598
        %730 = vst [vmem:[%s211 + $0xa0] sm:$0xff] %v601
        %731 = vst [vmem:[%s211 + $0xa8] sm:$0xff] %v603
        %732 = vst [vmem:[%s211 + $0xb0] sm:$0xff] %v606
        %733 = vst [vmem:[%s211 + $0xb8] sm:$0xff] %v608
        %734 = vst [vmem:[%s211 + $0xc0] sm:$0xff] %v611
        %735 = vst [vmem:[%s211 + $0xc8] sm:$0xff] %v613
        %736 = vst [vmem:[%s211 + $0xd0] sm:$0xff] %v616
        %737 = vst [vmem:[%s211 + $0xd8] sm:$0xff] %v618
        %738 = vst [vmem:[%s211 + $0xe0] sm:$0xff] %v621
        %739 = vst [vmem:[%s211 + $0xe8] sm:$0xff] %v623
        %740 = vst [vmem:[%s211 + $0xf0] sm:$0xff] %v626
        %741 = vst [vmem:[%s211 + $0xf8] sm:$0xff] %v628
        %742 = vst [vmem:[%s211 + $0x100] sm:$0xff] %v631
        %743 = vst [vmem:[%s211 + $0x108] sm:$0xff] %v633
        %744 = vst [vmem:[%s211 + $0x110] sm:$0xff] %v636
        %745 = vst [vmem:[%s211 + $0x118] sm:$0xff] %v638
        %746 = vst [vmem:[%s211 + $0x120] sm:$0xff] %v641
        %747 = vst [vmem:[%s211 + $0x128] sm:$0xff] %v643
        %748 = vst [vmem:[%s211 + $0x130] sm:$0xff] %v646
        %749 = vst [vmem:[%s211 + $0x138] sm:$0xff] %v648
        %750 = vst [vmem:[%s211 + $0x140] sm:$0xff] %v651
        %751 = vst [vmem:[%s211 + $0x148] sm:$0xff] %v653
        %752 = vst [vmem:[%s211 + $0x150] sm:$0xff] %v656
        %753 = vst [vmem:[%s211 + $0x158] sm:$0xff] %v658
        %754 = vst [vmem:[%s211 + $0x160] sm:$0xff] %v661
        %755 = vst [vmem:[%s211 + $0x168] sm:$0xff] %v663
        %756 = vst [vmem:[%s211 + $0x170] sm:$0xff] %v666
        %757 = vst [vmem:[%s211 + $0x178] sm:$0xff] %v668
        %758 = vst [vmem:[%s211 + $0x180] sm:$0xff] %v671
        %759 = vst [vmem:[%s211 + $0x188] sm:$0xff] %v673
        %760 = vst [vmem:[%s211 + $0x190] sm:$0xff] %v676
        %761 = vst [vmem:[%s211 + $0x198] sm:$0xff] %v678
        %762 = vst [vmem:[%s211 + $0x1a0] sm:$0xff] %v681
        %763 = vst [vmem:[%s211 + $0x1a8] sm:$0xff] %v683
        %764 = vst [vmem:[%s211 + $0x1b0] sm:$0xff] %v686
        %765 = vst [vmem:[%s211 + $0x1b8] sm:$0xff] %v688
        %766 = vst [vmem:[%s211 + $0x1c0] sm:$0xff] %v691
        %767 = vst [vmem:[%s211 + $0x1c8] sm:$0xff] %v693
        %768 = vst [vmem:[%s211 + $0x1d0] sm:$0xff] %v696
        %769 = vst [vmem:[%s211 + $0x1d8] sm:$0xff] %v698
        %770 = vst [vmem:[%s211 + $0x1e0] sm:$0xff] %v701
        %771 = vst [vmem:[%s211 + $0x1e8] sm:$0xff] %v703
        %772 = vst [vmem:[%s211 + $0x1f0] sm:$0xff] %v706
        %773 = vst [vmem:[%s211 + $0x1f8] sm:$0xff] %v708
        %v774 = vadd.f32 %v551, %v553
        %v775 = vadd.f32 %v774, %v556
        %v776 = vadd.f32 %v775, %v558
        %v777 = vadd.f32 %v776, %v561
        %v778 = vadd.f32 %v777, %v563
        %v779 = vadd.f32 %v778, %v566
        %v780 = vadd.f32 %v779, %v568
        %v781 = vadd.f32 %v780, %v571
        %v782 = vadd.f32 %v781, %v573
        %v783 = vadd.f32 %v782, %v576
        %v784 = vadd.f32 %v783, %v578
        %v785 = vadd.f32 %v784, %v581
        %v786 = vadd.f32 %v785, %v583
        %v787 = vadd.f32 %v786, %v586
        %v788 = vadd.f32 %v787, %v588
        %v789 = vadd.f32 %v788, %v591
        %v790 = vadd.f32 %v789, %v593
        %v791 = vadd.f32 %v790, %v596
        %v792 = vadd.f32 %v791, %v598
        %v793 = vadd.f32 %v792, %v601
        %v794 = vadd.f32 %v793, %v603
        %v795 = vadd.f32 %v794, %v606
        %v796 = vadd.f32 %v795, %v608
        %v797 = vadd.f32 %v796, %v611
        %v798 = vadd.f32 %v797, %v613
        %v799 = vadd.f32 %v798, %v616
        %v800 = vadd.f32 %v799, %v618
        %v801 = vadd.f32 %v800, %v621
        %v802 = vadd.f32 %v801, %v623
        %v803 = vadd.f32 %v802, %v626
        %v804 = vadd.f32 %v803, %v628
        %v805 = vadd.f32 %v804, %v631
        %v806 = vadd.f32 %v805, %v633
        %v807 = vadd.f32 %v806, %v636
        %v808 = vadd.f32 %v807, %v638
        %v809 = vadd.f32 %v808, %v641
        %v810 = vadd.f32 %v809, %v643
        %v811 = vadd.f32 %v810, %v646
        %v812 = vadd.f32 %v811, %v648
        %v813 = vadd.f32 %v812, %v651
        %v814 = vadd.f32 %v813, %v653
        %v815 = vadd.f32 %v814, %v656
        %v816 = vadd.f32 %v815, %v658
        %v817 = vadd.f32 %v816, %v661
        %v818 = vadd.f32 %v817, %v663
        %v819 = vadd.f32 %v818, %v666
        %v820 = vadd.f32 %v819, %v668
        %v821 = vadd.f32 %v820, %v671
        %v822 = vadd.f32 %v821, %v673
        %v823 = vadd.f32 %v822, %v676
        %v824 = vadd.f32 %v823, %v678
        %v825 = vadd.f32 %v824, %v681
        %v826 = vadd.f32 %v825, %v683
        %v827 = vadd.f32 %v826, %v686
        %v828 = vadd.f32 %v827, %v688
        %v829 = vadd.f32 %v828, %v691
        %v830 = vadd.f32 %v829, %v693
        %v831 = vadd.f32 %v830, %v696
        %v832 = vadd.f32 %v831, %v698
        %v833 = vadd.f32 %v832, %v701
        %v834 = vadd.f32 %v833, %v703
        %v835 = vadd.f32 %v834, %v706
        %v836 = vadd.f32 %v835, %v708
        %v837 = vrot.slane %v836, 4
        %v838 = vadd.f32 %v836, %v837
        %v839 = vrot.slane %v838, 2
        %v840 = vadd.f32 %v838, %v839
        %v841 = vrot.slane %v840, 1
        %v842 = vadd.f32 %v840, %v841
        %v843 = vmul.f32 %v551, %v551
        %v844 = vmul.f32 %v553, %v553
        %v845 = vmul.f32 %v556, %v556
        %v846 = vmul.f32 %v558, %v558
        %v847 = vmul.f32 %v561, %v561
        %v848 = vmul.f32 %v563, %v563
        %v849 = vmul.f32 %v566, %v566
        %v850 = vmul.f32 %v568, %v568
        %v851 = vmul.f32 %v571, %v571
        %v852 = vmul.f32 %v573, %v573
        %v853 = vmul.f32 %v576, %v576
        %v854 = vmul.f32 %v578, %v578
        %v855 = vmul.f32 %v581, %v581
        %v856 = vmul.f32 %v583, %v583
        %v857 = vmul.f32 %v586, %v586
        %v858 = vmul.f32 %v588, %v588
        %v859 = vmul.f32 %v591, %v591
        %v860 = vmul.f32 %v593, %v593
        %v861 = vmul.f32 %v596, %v596
        %v862 = vmul.f32 %v598, %v598
        %v863 = vmul.f32 %v601, %v601
        %v864 = vmul.f32 %v603, %v603
        %v865 = vmul.f32 %v606, %v606
        %v866 = vmul.f32 %v608, %v608
        %v867 = vmul.f32 %v611, %v611
        %v868 = vmul.f32 %v613, %v613
        %v869 = vmul.f32 %v616, %v616
        %v870 = vmul.f32 %v618, %v618
        %v871 = vmul.f32 %v621, %v621
        %v872 = vmul.f32 %v623, %v623
        %v873 = vmul.f32 %v626, %v626
        %v874 = vmul.f32 %v628, %v628
        %v875 = vmul.f32 %v631, %v631
        %v876 = vmul.f32 %v633, %v633
        %v877 = vmul.f32 %v636, %v636
        %v878 = vmul.f32 %v638, %v638
        %v879 = vmul.f32 %v641, %v641
        %v880 = vmul.f32 %v643, %v643
        %v881 = vmul.f32 %v646, %v646
        %v882 = vmul.f32 %v648, %v648
        %v883 = vmul.f32 %v651, %v651
        %v884 = vmul.f32 %v653, %v653
        %v885 = vmul.f32 %v656, %v656
        %v886 = vmul.f32 %v658, %v658
        %v887 = vmul.f32 %v661, %v661
        %v888 = vmul.f32 %v663, %v663
        %v889 = vmul.f32 %v666, %v666
        %v890 = vmul.f32 %v668, %v668
        %v891 = vmul.f32 %v671, %v671
        %v892 = vmul.f32 %v673, %v673
        %v893 = vmul.f32 %v676, %v676
        %v894 = vmul.f32 %v678, %v678
        %v895 = vmul.f32 %v681, %v681
        %v896 = vmul.f32 %v683, %v683
        %v897 = vmul.f32 %v686, %v686
        %v898 = vmul.f32 %v688, %v688
        %v899 = vmul.f32 %v691, %v691
        %v900 = vmul.f32 %v693, %v693
        %v901 = vmul.f32 %v696, %v696
        %v902 = vmul.f32 %v698, %v698
        %v903 = vmul.f32 %v701, %v701
        %v904 = vmul.f32 %v703, %v703
        %v905 = vmul.f32 %v706, %v706
        %v906 = vmul.f32 %v708, %v708
        %v907 = vadd.f32 %v843, %v844
        %v908 = vadd.f32 %v907, %v845
        %v909 = vadd.f32 %v908, %v846
        %v910 = vadd.f32 %v909, %v847
        %v911 = vadd.f32 %v910, %v848
        %v912 = vadd.f32 %v911, %v849
        %v913 = vadd.f32 %v912, %v850
        %v914 = vadd.f32 %v913, %v851
        %v915 = vadd.f32 %v914, %v852
        %v916 = vadd.f32 %v915, %v853
        %v917 = vadd.f32 %v916, %v854
        %v918 = vadd.f32 %v917, %v855
        %v919 = vadd.f32 %v918, %v856
        %v920 = vadd.f32 %v919, %v857
        %v921 = vadd.f32 %v920, %v858
        %v922 = vadd.f32 %v921, %v859
        %v923 = vadd.f32 %v922, %v860
        %v924 = vadd.f32 %v923, %v861
        %v925 = vadd.f32 %v924, %v862
        %v926 = vadd.f32 %v925, %v863
        %v927 = vadd.f32 %v926, %v864
        %v928 = vadd.f32 %v927, %v865
        %v929 = vadd.f32 %v928, %v866
        %v930 = vadd.f32 %v929, %v867
        %v931 = vadd.f32 %v930, %v868
        %v932 = vadd.f32 %v931, %v869
        %v933 = vadd.f32 %v932, %v870
        %v934 = vadd.f32 %v933, %v871
        %v935 = vadd.f32 %v934, %v872
        %v936 = vadd.f32 %v935, %v873
        %v937 = vadd.f32 %v936, %v874
        %v938 = vadd.f32 %v937, %v875
        %v939 = vadd.f32 %v938, %v876
        %v940 = vadd.f32 %v939, %v877
        %v941 = vadd.f32 %v940, %v878
        %v942 = vadd.f32 %v941, %v879
        %v943 = vadd.f32 %v942, %v880
        %v944 = vadd.f32 %v943, %v881
        %v945 = vadd.f32 %v944, %v882
        %v946 = vadd.f32 %v945, %v883
        %v947 = vadd.f32 %v946, %v884
        %v948 = vadd.f32 %v947, %v885
        %v949 = vadd.f32 %v948, %v886
        %v950 = vadd.f32 %v949, %v887
        %v951 = vadd.f32 %v950, %v888
        %v952 = vadd.f32 %v951, %v889
        %v953 = vadd.f32 %v952, %v890
        %v954 = vadd.f32 %v953, %v891
        %v955 = vadd.f32 %v954, %v892
        %v956 = vadd.f32 %v955, %v893
        %v957 = vadd.f32 %v956, %v894
        %v958 = vadd.f32 %v957, %v895
        %v959 = vadd.f32 %v958, %v896
        %v960 = vadd.f32 %v959, %v897
        %v961 = vadd.f32 %v960, %v898
        %v962 = vadd.f32 %v961, %v899
        %v963 = vadd.f32 %v962, %v900
        %v964 = vadd.f32 %v963, %v901
        %v965 = vadd.f32 %v964, %v902
        %v966 = vadd.f32 %v965, %v903
        %v967 = vadd.f32 %v966, %v904
        %v968 = vadd.f32 %v967, %v905
        %v969 = vadd.f32 %v968, %v906
        %v970 = vrot.slane %v969, 4
        %v971 = vadd.f32 %v969, %v970
        %v972 = vrot.slane %v971, 2
        %v973 = vadd.f32 %v971, %v972
        %v974 = vrot.slane %v973, 1
        %v975 = vadd.f32 %v973, %v974
        %v976 = vlaneseq
        %v977 = vshrl.u32 %v976, 7
        %vm978 = vcmp.eq.s32.totalorder %v977, 0
        %vm979 = vcmp.eq.s32.totalorder %v977, 1
        %v980 = vsel %vm979, %v975, 0.0
        %v981 = vsel %vm978, %v842, %v980
        %982 = vst [vmem:[%s218] sm:$0xff] %v981
        %s983 = sand.u32 %s80, 1
        %s984 = scalar_lea.sflag [#allocation4], %s983
        %s985 = sand.u32 %s80, 1
        %s986 = smul.addr %s985, 512
        %s987 = scalar_lea.vmem [#allocation7], %s986
        %s988 = sand.u32 %s106, 1
        %s989 = scalar_lea.sflag [#allocation9], %s988
        %s990 = sand.u32 %s106, 1
        %s991 = smul.addr %s990, 8
        %s992 = scalar_lea.vmem [#allocation8], %s991
        // Predicated region
        $region37: #{tpu_custom_call.1} parent=27 // pred_check
          %p993 = pneg %p90
        $region38: #{tpu_custom_call.1} parent=27 // pred_check_branch
          %995 = sbr.rel (%p993) target = $region40
        $region39: #{tpu_custom_call.1} parent=27 // pred_region
          %s996 = smul.u32 64, %s25
          %998 = vsyncadd %s984, 0
          %s999 = smul.addr %s996, 8
          %s1000 = scalar_lea.hbm %s2, %s999
          %s1001 = sshll.u32 %s987, 4
          %s1002 = int_to_ptr.vmem [resolvable:$true] %s1001
          %s1003 = sshll.u32 %s1000, 4
          %s1004 = int_to_ptr.hbm [resolvable:$true] %s1003
          %1009 = dma.vmem_to_hbm [thread:$0]  %s1002, 8192, %s1004, %s984, 128, 128, 8
        $region40: #{tpu_custom_call.1} parent=27 // pred_fallthru
          _
        // Predicated region
        $region41: #{tpu_custom_call.1} parent=27 // pred_check
          %p1010 = pneg %p116
        $region42: #{tpu_custom_call.1} parent=27 // pred_check_branch
          %1012 = sbr.rel (%p1010) target = $region44
        $region43: #{tpu_custom_call.1} parent=27 // pred_region
          %1014 = vsyncadd %s989, 0
          %s1015 = smul.addr %s25, 8
          %s1016 = scalar_lea.hbm %s3, %s1015
          %s1018 = sshll.u32 %s992, 4
          %s1019 = int_to_ptr.vmem [resolvable:$true] %s1018
          %s1020 = sshll.u32 %s1016, 4
          %s1021 = int_to_ptr.hbm [resolvable:$true] %s1020
          %1023 = dma.vmem_to_hbm [thread:$0]  %s1019, 128, %s1021, %s989
        $region44: #{tpu_custom_call.1} parent=27 // pred_fallthru
          _
      $region28: #{tpu_custom_call.1} parent=5 // pred_fallthru
        _
      %p1024 = scmp.le.s32.totalorder 2, %s20
      // Predicated region
      $region45: #{tpu_custom_call.1} parent=5 // pred_check
        %p1025 = pneg %p1024
      $region46: #{tpu_custom_call.1} parent=5 // pred_check_branch
        %1027 = sbr.rel (%p1025) target = $region48
      $region47: #{tpu_custom_call.1} parent=5 // pred_region
        %s1028 = ssub.s32 %s20, 2
        // Predicated region
        $region49: #{tpu_custom_call.1} parent=47 // pred_check
          %p1029 = pneg %p96
        $region50: #{tpu_custom_call.1} parent=47 // pred_check_branch
          %1031 = sbr.rel (%p1029) target = $region52
        $region51: #{tpu_custom_call.1} parent=47 // pred_region
          %s1032 = sand.u32 %s81, 1
          %s1033 = scalar_lea.sflag [#allocation4], %s1032
          %s1034 = sand.u32 %s81, 1
          %s1035 = smul.addr %s1034, 512
          %s1036 = scalar_lea.vmem [#allocation7], %s1035
          %1038 = dma.done %s1033, 8192
        $region52: #{tpu_custom_call.1} parent=47 // pred_fallthru
          _
        // Predicated region
        $region53: #{tpu_custom_call.1} parent=47 // pred_check
          %p1039 = pneg %p122
        $region54: #{tpu_custom_call.1} parent=47 // pred_check_branch
          %1041 = sbr.rel (%p1039) target = $region56
        $region55: #{tpu_custom_call.1} parent=47 // pred_region
          %s1042 = sand.u32 %s107, 1
          %s1043 = scalar_lea.sflag [#allocation9], %s1042
          %s1044 = sand.u32 %s107, 1
          %s1045 = smul.addr %s1044, 8
          %s1046 = scalar_lea.vmem [#allocation8], %s1045
          %1048 = dma.done %s1043, 128
        $region56: #{tpu_custom_call.1} parent=47 // pred_fallthru
          _
      $region48: #{tpu_custom_call.1} parent=5 // pred_fallthru
        _
    $region6: #{tpu_custom_call.1} parent=1 // loop_footer
      %s24 = sadd.s32 1, %s20
    $region7: #{tpu_custom_call.1} parent=1 // loop_footer_branch
      %19 = sbr.rel target = $region3
    $region8: #{tpu_custom_call.1} parent=1 // loop_exit
      _
    %1049 = vsyncpa [#allocation3], 1
    %s1050 = scalar_lea.sflag [#allocation3], 1
    %1051 = vsyncpa %s1050, 1
    %1052 = vsyncpa [#allocation6], 1
    %1053 = vsyncpa [#allocation4], 1
    %s1054 = scalar_lea.sflag [#allocation4], 1
    %1055 = vsyncpa %s1054, 1
    %1056 = vsyncpa [#allocation9], 1
    %s1057 = scalar_lea.sflag [#allocation9], 1
    %1058 = vsyncpa %s1057, 1

</llo_original>
